<compile_context>
chip_gen: v5e
topology: v5e:2x2
jax: 0.10.0
libtpu: 0.0.40
codegen_flags: <defaults>
</compile_context>

<pallas_src>
import functools

import jax
import jax.numpy as jnp
from jax.experimental import pallas as pl
from jax.experimental.pallas import tpu as pltpu

SUBLANE = 8  # TPU sublane width (second-to-last dim tiling granule)


def _round_up(n, m):
    return (n + m - 1) // m * m


def _dnn_kernel(x_ref, w1_ref, b1_ref, w2_ref, b2_ref, o_ref):
    # Hidden layer: x @ W1 (MXU, f32 accumulate) + b1, then ReLU (VPU).
    h = jnp.dot(x_ref[...], w1_ref[...], preferred_element_type=jnp.float32)
    h = jnp.maximum(h + b1_ref[...].astype(jnp.float32), 0.0)   # (TB,H)+(1,H)
    # Output layer: h @ W2 + b2.  Cast h to the weight dtype so a bf16 weight
    # path uses the bf16 MXU; no-op for the f32 path.  (bf16 rounding of h
    # compounds layer error slightly; keep h f32 here if tighter accuracy is
    # ever needed.)
    out = jnp.dot(h.astype(w2_ref.dtype), w2_ref[...],
                  preferred_element_type=jnp.float32)
    o_ref[...] = (out + b2_ref[...].astype(jnp.float32)).astype(o_ref.dtype)


@functools.partial(jax.jit, static_argnames=("block_batch",))
def dnn_forward(x, w1, b1, w2, b2, *, block_batch=2048):
    """x: (B, state), w1: (state, hidden), b1: (1, hidden) or (hidden,),
       w2: (hidden, action), b2: (1, action) or (action,)
       -> (B, action) in x.dtype."""
    B, S = x.shape
    H = w1.shape[1]
    A = w2.shape[1]
    b1 = b1.reshape(1, H)
    b2 = b2.reshape(1, A)

    # Batch tile: <= block_batch rows, multiple of 8 sublanes, and when the
    # batch is large enough keep at least 2 grid steps so the "parallel" axis
    # can be split across both TensorCores on v7x.
    TB = min(_round_up(block_batch, SUBLANE), _round_up(B, SUBLANE))
    if B > 2 * SUBLANE:
        TB = min(TB, _round_up(pl.cdiv(B, 2), SUBLANE))
    grid = (pl.cdiv(B, TB),)

    itemsize = x.dtype.itemsize
    cost = pl.CostEstimate(
        flops=2 * B * (S * H + H * A),
        transcendentals=0,
        bytes_accessed=(B * S * itemsize + B * A * itemsize
                        + w1.size * w1.dtype.itemsize
                        + w2.size * w2.dtype.itemsize
                        + b1.size * b1.dtype.itemsize
                        + b2.size * b2.dtype.itemsize),
    )

    out = pl.pallas_call(
        _dnn_kernel,
        out_shape=jax.ShapeDtypeStruct((B, A), x.dtype),
        grid=grid,
        in_specs=[
            pl.BlockSpec((TB, S), lambda i: (i, 0)),   # streamed activations
            pl.BlockSpec((S, H), lambda i: (0, 0)),    # VMEM-resident W1
            pl.BlockSpec((1, H), lambda i: (0, 0)),    # VMEM-resident b1
            pl.BlockSpec((H, A), lambda i: (0, 0)),    # VMEM-resident W2
            pl.BlockSpec((1, A), lambda i: (0, 0)),    # VMEM-resident b2
        ],
        out_specs=pl.BlockSpec((TB, A), lambda i: (i, 0)),
        compiler_params=pltpu.CompilerParams(
            dimension_semantics=("parallel",)),        # megacore on v7x
        cost_estimate=cost,
    )(x, w1, b1, w2, b2)
    return out


def init_params(key, state_size, hidden_size, action_size, dtype=jnp.float32):
    """Deterministic init matching nn.Linear's U(-1/sqrt(fan_in), 1/sqrt(fan_in))."""
    k1, k2, k3, k4 = jax.random.split(key, 4)
    bound1 = 1.0 / jnp.sqrt(state_size)
    bound2 = 1.0 / jnp.sqrt(hidden_size)
    w1 = jax.random.uniform(k1, (state_size, hidden_size), dtype,
                            minval=-bound1, maxval=bound1)
    b1 = jax.random.uniform(k2, (1, hidden_size), dtype,
                            minval=-bound1, maxval=bound1)
    w2 = jax.random.uniform(k3, (hidden_size, action_size), dtype,
                            minval=-bound2, maxval=bound2)
    b2 = jax.random.uniform(k4, (1, action_size), dtype,
                            minval=-bound2, maxval=bound2)
    return w1, b1, w2, b2


def reference_forward(x, w1, b1, w2, b2):
    h = jnp.maximum(x @ w1 + b1.reshape(1, -1), 0.0)
    return h @ w2 + b2.reshape(1, -1)


if __name__ == "__main__":
    state_size, hidden_size, action_size = 32, 64, 16

    key = jax.random.PRNGKey(0)
    kx, kp, kx2 = jax.random.split(key, 3)
    w1, b1, w2, b2 = init_params(kp, state_size, hidden_size, action_size)

    # --- small batch (matches the RL-style use of the original module) ---
    batch = 8
    x = jax.random.normal(kx, (batch, state_size), jnp.float32)
    out = jax.block_until_ready(dnn_forward(x, w1, b1, w2, b2))
    ref = reference_forward(x, w1, b1, w2, b2)
    assert out.shape == (batch, action_size)
    assert jnp.allclose(out, ref, atol=1e-5, rtol=1e-5)

    # --- larger, ragged batch: exercises cdiv batch tiling (>=2 grid steps,
    # --- masked partial last block) with VMEM-resident weights ---
    batch2 = 517
    x2 = jax.random.normal(kx2, (batch2, state_size), jnp.float32)
    out2 = jax.block_until_ready(dnn_forward(x2, w1, b1, w2, b2))
    ref2 = reference_forward(x2, w1, b1, w2, b2)
    assert out2.shape == (batch2, action_size)
    assert jnp.allclose(out2, ref2, atol=1e-5, rtol=1e-5)

    # --- bf16 path: only valid when activations/weights already arrive in
    # --- bf16 upstream (no wrapper-side cast of x is ever done) ---
    x2_bf = x2.astype(jnp.bfloat16)
    params_bf = tuple(p.astype(jnp.bfloat16) for p in (w1, b1, w2, b2))
    out_bf16 = jax.block_until_ready(dnn_forward(x2_bf, *params_bf))
    assert out_bf16.shape == (batch2, action_size)
    assert out_bf16.dtype == jnp.bfloat16
    assert bool(jnp.all(jnp.isfinite(out_bf16.astype(jnp.float32))))
    assert jnp.allclose(out_bf16.astype(jnp.float32), ref2, atol=0.3, rtol=0.3)

    print("KERNEL_OK")
</pallas_src>

<mosaic_0001>
module attributes {stable_mosaic.version = 11 : i64} {
  func.func @_dnn_kernel(%arg0: i32, %arg1: memref<8x32xf32, #tpu.memory_space<vmem>>, %arg2: memref<32x64xf32, #tpu.memory_space<vmem>>, %arg3: memref<1x64xf32, #tpu.memory_space<vmem>>, %arg4: memref<64x16xf32, #tpu.memory_space<vmem>>, %arg5: memref<1x16xf32, #tpu.memory_space<vmem>>, %arg6: memref<8x16xf32, #tpu.memory_space<vmem>>) attributes {dimension_semantics = [#tpu.dimension_semantics<parallel>], iteration_bounds = array<i64: 1>, scalar_prefetch = 0 : i64, scratch_operands = 0 : i64, tpu.core_type = #tpu.core_type<tc>, window_params = [{transform_indices = @transform_0, window_bounds = array<i64: 8, 32>}, {pipeline_mode = #tpu.pipeline_mode<synchronous>, transform_indices = @transform_1, window_bounds = array<i64: 32, 64>}, {pipeline_mode = #tpu.pipeline_mode<synchronous>, transform_indices = @transform_2, window_bounds = array<i64: 1, 64>}, {pipeline_mode = #tpu.pipeline_mode<synchronous>, transform_indices = @transform_3, window_bounds = array<i64: 64, 16>}, {pipeline_mode = #tpu.pipeline_mode<synchronous>, transform_indices = @transform_4, window_bounds = array<i64: 1, 16>}, {transform_indices = @transform_5, window_bounds = array<i64: 8, 16>}]} {
    %c0 = arith.constant 0 : index
    %c0_0 = arith.constant 0 : index
    %0 = vector.load %arg1[%c0, %c0_0] : memref<8x32xf32, #tpu.memory_space<vmem>>, vector<8x32xf32>
    %c0_1 = arith.constant 0 : index
    %c0_2 = arith.constant 0 : index
    %1 = vector.load %arg2[%c0_1, %c0_2] : memref<32x64xf32, #tpu.memory_space<vmem>>, vector<32x64xf32>
    %cst = arith.constant dense<0.000000e+00> : vector<8x64xf32>
    %2 = tpu.matmul %0, %1, %cst {dimension_numbers = #tpu.dot_dimension_numbers<[1], [0], [0], [1], [0, 0, 1, 1], [], []>} : vector<8x32xf32>, vector<32x64xf32>, vector<8x64xf32> -> vector<8x64xf32>
    %c0_3 = arith.constant 0 : index
    %c0_4 = arith.constant 0 : index
    %3 = vector.load %arg3[%c0_3, %c0_4] : memref<1x64xf32, #tpu.memory_space<vmem>>, vector<1x64xf32>
    %4 = vector.broadcast %3 : vector<1x64xf32> to vector<8x64xf32>
    %5 = arith.addf %2, %4 : vector<8x64xf32>
    %cst_5 = arith.constant 0.000000e+00 : f32
    %6 = vector.broadcast %cst_5 : f32 to vector<8x64xf32>
    %7 = arith.maximumf %5, %6 : vector<8x64xf32>
    %c0_6 = arith.constant 0 : index
    %c0_7 = arith.constant 0 : index
    %8 = vector.load %arg4[%c0_6, %c0_7] : memref<64x16xf32, #tpu.memory_space<vmem>>, vector<64x16xf32>
    %cst_8 = arith.constant dense<0.000000e+00> : vector<8x16xf32>
    %9 = tpu.matmul %7, %8, %cst_8 {dimension_numbers = #tpu.dot_dimension_numbers<[1], [0], [0], [1], [0, 0, 1, 1], [], []>} : vector<8x64xf32>, vector<64x16xf32>, vector<8x16xf32> -> vector<8x16xf32>
    %c0_9 = arith.constant 0 : index
    %c0_10 = arith.constant 0 : index
    %10 = vector.load %arg5[%c0_9, %c0_10] : memref<1x16xf32, #tpu.memory_space<vmem>>, vector<1x16xf32>
    %11 = vector.broadcast %10 : vector<1x16xf32> to vector<8x16xf32>
    %12 = arith.addf %9, %11 : vector<8x16xf32>
    %c0_11 = arith.constant 0 : index
    %c0_12 = arith.constant 0 : index
    %13 = vector.load %arg6[%c0_11, %c0_12] : memref<8x16xf32, #tpu.memory_space<vmem>>, vector<8x16xf32>
    tpu.vector_store %arg6[%c0_11, %c0_12], %12 {strides = array<i32>} : memref<8x16xf32, #tpu.memory_space<vmem>>, vector<8x16xf32>,
    return
  }
  func.func @transform_0(%arg0: i32) -> (i32, i32) {
    %c0_i32 = arith.constant 0 : i32
    %c0_i32_0 = arith.constant 0 : i32
    return %arg0, %c0_i32 : i32, i32
  }
  func.func @transform_1(%arg0: i32) -> (i32, i32) {
    %c0_i32 = arith.constant 0 : i32
    %c0_i32_0 = arith.constant 0 : i32
    %c0_i32_1 = arith.constant 0 : i32
    return %c0_i32, %c0_i32_0 : i32, i32
  }
  func.func @transform_2(%arg0: i32) -> (i32, i32) {
    %c0_i32 = arith.constant 0 : i32
    %c0_i32_0 = arith.constant 0 : i32
    %c0_i32_1 = arith.constant 0 : i32
    return %c0_i32, %c0_i32_0 : i32, i32
  }
  func.func @transform_3(%arg0: i32) -> (i32, i32) {
    %c0_i32 = arith.constant 0 : i32
    %c0_i32_0 = arith.constant 0 : i32
    %c0_i32_1 = arith.constant 0 : i32
    return %c0_i32, %c0_i32_0 : i32, i32
  }
  func.func @transform_4(%arg0: i32) -> (i32, i32) {
    %c0_i32 = arith.constant 0 : i32
    %c0_i32_0 = arith.constant 0 : i32
    %c0_i32_1 = arith.constant 0 : i32
    return %c0_i32, %c0_i32_0 : i32, i32
  }
  func.func @transform_5(%arg0: i32) -> (i32, i32) {
    %c0_i32 = arith.constant 0 : i32
    %c0_i32_0 = arith.constant 0 : i32
    return %arg0, %c0_i32 : i32, i32
  }
}

</mosaic_0001>

<llo_original>
// kernel: dnn_forward.1
$region0: #{dnn_forward.1}
  #allocation0 [shape = 'u32[]', space=smem, size = 0x4, offset = 0x4, fixed_abs, tag = 'smem constant byte address 0x4 - core index']
  #allocation1 [shape = 'u32[72,128]{1,0:T(1,128)}', space=vmem, size = 0x9000, scoped, tag = 'internal scratch']
  %s0 = inlined_call_operand.vmem [shape: f32[8,32], index: 0, kind: input, shape index: {}]
  %s1 = inlined_call_operand.vmem [shape: f32[32,64], index: 1, kind: input, shape index: {}]
  %s2 = inlined_call_operand.vmem [shape: f32[1,64], index: 2, kind: input, shape index: {}]
  %s3 = inlined_call_operand.vmem [shape: f32[64,16], index: 3, kind: input, shape index: {}]
  %s4 = inlined_call_operand.vmem [shape: f32[1,16], index: 4, kind: input, shape index: {}]
  %s5 = inlined_call_operand.hbm [shape: f32[8,16], index: 5, kind: output, shape index: {}]
  %s6 = sld [smem:[#allocation0]]
  $region30: #{dnn_forward.1} parent=0
    _
  %s8 = ssub.s32 1, %s6
  %s9 = scalar_select 0, %s8, %s6
  $region1: #{dnn_forward.1} parent=0
    #allocation2 [shape = 'u8[4096]{0}', space=vmem, size = 0x1000, scoped, tag = 'output window, operand 0, single buffered']
    #allocation3 [shape = 's32[1]{0}', space=sflag, size = 0x4, scoped, tag = 'scoped memory for dnn_forward.1']
    %10 = vsyncpa [#allocation3], 0
    // Predicated region
    $region2: #{dnn_forward.1} parent=1 // pred_check
      _
    $region3: #{dnn_forward.1} parent=1 // pred_check_branch
      %12 = sbr.rel (0) target = $region5
    $region4: #{dnn_forward.1} parent=1 // pred_region
      _
    $region5: #{dnn_forward.1} parent=1 // pred_fallthru
      _
    // Predicated region
    $region6: #{dnn_forward.1} parent=1 // pred_check
      _
    $region7: #{dnn_forward.1} parent=1 // pred_check_branch
      %14 = sbr.rel (0) target = $region9
    $region8: #{dnn_forward.1} parent=1 // pred_region
      _
    $region9: #{dnn_forward.1} parent=1 // pred_fallthru
      _
    // Predicated region
    $region10: #{dnn_forward.1} parent=1 // pred_check
      _
    $region11: #{dnn_forward.1} parent=1 // pred_check_branch
      %16 = sbr.rel (0) target = $region13
    $region12: #{dnn_forward.1} parent=1 // pred_region
      _
    $region13: #{dnn_forward.1} parent=1 // pred_fallthru
      _
    // Predicated region
    $region14: #{dnn_forward.1} parent=1 // pred_check
      _
    $region15: #{dnn_forward.1} parent=1 // pred_check_branch
      %18 = sbr.rel (0) target = $region17
    $region16: #{dnn_forward.1} parent=1 // pred_region
      _
    $region17: #{dnn_forward.1} parent=1 // pred_fallthru
      _
    // Predicated region
    $region18: #{dnn_forward.1} parent=1 // pred_check
      _
    $region19: #{dnn_forward.1} parent=1 // pred_check_branch
      %20 = sbr.rel (0) target = $region21
    $region20: #{dnn_forward.1} parent=1 // pred_region
      _
    $region21: #{dnn_forward.1} parent=1 // pred_fallthru
      _
    %v21 = vld [vmem:[%s0] sm:$0xff]
    %v22 = vld [vmem:[%s1] sm:$0xff]
    %v23 = vld [vmem:[%s1 + $0x8] sm:$0xff]
    %v24 = vld [vmem:[%s1 + $0x10] sm:$0xff]
    %v25 = vld [vmem:[%s1 + $0x18] sm:$0xff]
    %v26 = vld [vmem:[%s2] sm:$0x1]
    %v28 = vperm.slane %v26, 0
    %vm30 = vcmask 261120
    %v32 = vsel %vm30, %v21, 0
    %34 = vmatpush.msra.mxu0 0.0
    %35 = vmatpush.msra.mxu0 0.0
    %36 = vmatpush.msra.mxu0 0.0
    %37 = vmatpush.msra.mxu0 0.0
    %38 = vmatpush.msra.mxu0 0.0
    %39 = vmatpush.msra.mxu0 0.0
    %40 = vmatpush.msra.mxu0 0.0
    %41 = vmatpush.msra.mxu0 0.0
    %42 = vmatpush.msra.mxu0 0.0
    %43 = vmatpush.msra.mxu0 0.0
    %44 = vmatpush.msra.mxu0 0.0
    %45 = vmatpush.msra.mxu0 0.0
    %46 = vmatpush.msra.mxu0 %v25
    %47 = vmatpush.msra.mxu0 %v24
    %48 = vmatpush.msra.mxu0 %v23
    %49 = vmatpush.msra.mxu0 %v22
    %50 = vmatmul.f32.gmra.mxu0 %v32
    %v51 = vpop.f32.mrf.mxu0
    %v52 = vadd.f32 %v28, %v51
    %53 = vdwg.mxu0
    %v54 = vmax.f32 %v52, 0.0
    %v55 = vld [vmem:[%s3] sm:$0xff]
    %v56 = vld [vmem:[%s3 + $0x8] sm:$0xff]
    %v57 = vld [vmem:[%s3 + $0x10] sm:$0xff]
    %v58 = vld [vmem:[%s3 + $0x18] sm:$0xff]
    %v59 = vld [vmem:[%s3 + $0x20] sm:$0xff]
    %v60 = vld [vmem:[%s3 + $0x28] sm:$0xff]
    %v61 = vld [vmem:[%s3 + $0x30] sm:$0xff]
    %v62 = vld [vmem:[%s3 + $0x38] sm:$0xff]
    %v63 = vld [vmem:[%s4] sm:$0x1]
    %v65 = vperm.slane %v63, 0
    %vm67 = vcmask 523264
    %v69 = vsel %vm67, %v54, 0
    %71 = vmatpush.msra.mxu0 0.0
    %72 = vmatpush.msra.mxu0 0.0
    %73 = vmatpush.msra.mxu0 0.0
    %74 = vmatpush.msra.mxu0 0.0
    %75 = vmatpush.msra.mxu0 0.0
    %76 = vmatpush.msra.mxu0 0.0
    %77 = vmatpush.msra.mxu0 0.0
    %78 = vmatpush.msra.mxu0 0.0
    %79 = vmatpush.msra.mxu0 %v62
    %80 = vmatpush.msra.mxu0 %v61
    %81 = vmatpush.msra.mxu0 %v60
    %82 = vmatpush.msra.mxu0 %v59
    %83 = vmatpush.msra.mxu0 %v58
    %84 = vmatpush.msra.mxu0 %v57
    %85 = vmatpush.msra.mxu0 %v56
    %86 = vmatpush.msra.mxu0 %v55
    %87 = vmatmul.f32.gmra.mxu0 %v69
    %v88 = vpop.f32.mrf.mxu0
    %v89 = vadd.f32 %v65, %v88
    %90 = vdwg.mxu0
    %vm91 = vcmask 130048
    %92 = vst.msk [vmem:[#allocation2] sm:$0xff] %vm91, %v89
    // Predicated region
    $region22: #{dnn_forward.1} parent=1 // pred_check
      _
    $region23: #{dnn_forward.1} parent=1 // pred_check_branch
      %94 = sbr.rel (0) target = $region25
    $region24: #{dnn_forward.1} parent=1 // pred_region
      %96 = vsyncadd [#allocation3], 0
      %s98 = sshll.u32 [#allocation2], 4
      %s99 = int_to_ptr.vmem [resolvable:$true] %s98
      %s100 = sshll.u32 %s5, 4
      %s101 = int_to_ptr.hbm [resolvable:$true] %s100
      %103 = dma.vmem_to_hbm [thread:$0]  %s99, 128, %s101, [#allocation3]
    $region25: #{dnn_forward.1} parent=1 // pred_fallthru
      _
    // Predicated region
    $region26: #{dnn_forward.1} parent=1 // pred_check
      _
    $region27: #{dnn_forward.1} parent=1 // pred_check_branch
      %105 = sbr.rel (0) target = $region29
    $region28: #{dnn_forward.1} parent=1 // pred_region
      %107 = dma.done [#allocation3], 128
    $region29: #{dnn_forward.1} parent=1 // pred_fallthru
      _
    %108 = vsyncpa [#allocation3], 1

</llo_original>
